<compile_context>
chip_gen: v7x
topology: tpu7x:2x2x1
jax: 0.10.0
libtpu: 0.0.40
codegen_flags: <defaults>
</compile_context>

<pallas_src>
import jax
import jax.numpy as jnp
from jax import lax
from jax.experimental import pallas as pl
from jax.experimental.pallas import tpu as pltpu


def _round_up(a, m):
    return (a + m - 1) // m * m


def mlp_kernel(x_ref, w1_ref, b1_ref, w2t_ref, b2t_ref, ot_ref):
    # fc1 + ReLU (dropout == identity in eval mode); h stays in registers.
    h = jnp.dot(x_ref[...], w1_ref[...], preferred_element_type=jnp.float32)
    h = jnp.maximum(h + b1_ref[...], 0.0)            # (TB, 16) + (1, 16)
    # fc2, computed transposed so the output store is lane-dense:
    #   out_t = w2^T (2,16) . h^T (16,TB)  ->  (2, TB)
    out_t = lax.dot_general(
        w2t_ref[...], h,
        dimension_numbers=(((1,), (1,)), ((), ())),
        preferred_element_type=jnp.float32)
    ot_ref[...] = (out_t + b2t_ref[...]).astype(ot_ref.dtype)  # + (2, 1)


def baseline1_mlp(x, w1, b1, w2, b2, *, tb=4096, use_bf16=False):
    """x: (B, dim_in).  w1: (dim_in,16), b1: (1,16), w2: (16,2), b2: (1,2).

    tb: requested batch tile (rows per grid step); rounded to a multiple of
    128 and clamped so double-buffered tiles + resident weights fit the
    per-generation VMEM budget.
    """
    B, dim_in = x.shape
    n_hidden = w1.shape[1]
    n_out = w2.shape[1]
    out_dtype = jnp.float32

    in_dtype = jnp.bfloat16 if use_bf16 else x.dtype
    in_itemsize = jnp.dtype(in_dtype).itemsize

    # ---- VMEM budget (lane/sublane-padded sizes, x2 for double buffering) --
    din_lanes = _round_up(dim_in, 128)
    # per batch row: x tile (padded to 128 lanes) + transposed out tile
    # (2 rows padded to 8 sublanes -> 8 f32 per batch column).
    row_bytes = 2 * din_lanes * in_itemsize + 2 * 8 * 4
    w_vmem = 2 * (_round_up(dim_in, 8) * 128 * in_itemsize   # w1 (dim_in,16)
                  + 8 * 128 * 4                              # b1 (1,16)
                  + 8 * 128 * 4                              # w2^T (2,16)
                  + 8 * 128 * 4)                             # b2^T (2,1)
    try:
        vmem_cap = int(getattr(pltpu.get_tpu_info(), "vmem_capacity_bytes",
                               64 * 1024 * 1024))
    except Exception:
        vmem_cap = 64 * 1024 * 1024          # conservative (v7x per-TC)
    budget = vmem_cap * 3 // 4               # leave headroom for the compiler

    tb_cap = max((budget - w_vmem) // row_bytes, 128)
    tb_cap = max(tb_cap // 128 * 128, 128)

    # Tile: multiple of 128 (sublane-legal for x, lane-legal for out^T),
    # no larger than the VMEM cap or the (padded) batch.
    TB = int(min(_round_up(max(tb, 128), 128), tb_cap, _round_up(B, 128)))
    B_pad = _round_up(B, TB)
    grid = (B_pad // TB,)

    needed = TB * row_bytes + w_vmem
    vmem_limit = int(min(max(2 * needed, 8 * 1024 * 1024), budget))

    # ---- operand prep ------------------------------------------------------
    x_in = x.astype(in_dtype)
    if B_pad != B:
        x_in = jnp.pad(x_in, ((0, B_pad - B), (0, 0)))
    w1_in = w1.astype(in_dtype)
    b1_in = b1.astype(jnp.float32)
    w2t = w2.T.astype(jnp.float32)           # (n_out, 16)
    b2t = b2.T.astype(jnp.float32)           # (n_out, 1)

    flops = 2 * B_pad * dim_in * n_hidden + 2 * B_pad * n_hidden * n_out
    bytes_accessed = (B_pad * dim_in * in_itemsize          # x read
                      + B_pad * n_out * 4                   # out^T write
                      + (w1.size + b1.size + w2.size + b2.size) * 4)

    out_t = pl.pallas_call(
        mlp_kernel,
        out_shape=jax.ShapeDtypeStruct((n_out, B_pad), out_dtype),
        grid=grid,
        in_specs=[
            pl.BlockSpec((TB, dim_in), lambda i: (i, 0)),         # x tile
            pl.BlockSpec((dim_in, n_hidden), lambda i: (0, 0)),   # w1 resident
            pl.BlockSpec((1, n_hidden), lambda i: (0, 0)),        # b1 resident
            pl.BlockSpec((n_out, n_hidden), lambda i: (0, 0)),    # w2^T resident
            pl.BlockSpec((n_out, 1), lambda i: (0, 0)),           # b2^T resident
        ],
        # lane-dense transposed output: (n_out, TB) block, batch on lanes
        out_specs=pl.BlockSpec((n_out, TB), lambda i: (0, i)),
        compiler_params=pltpu.CompilerParams(
            dimension_semantics=("parallel",),
            vmem_limit_bytes=vmem_limit,
        ),
        cost_estimate=pl.CostEstimate(
            flops=flops, transcendentals=0, bytes_accessed=bytes_accessed),
    )(x_in, w1_in, b1_in, w2t, b2t)

    out = out_t[:, :B].T if B_pad != B else out_t.T
    return out.astype(x.dtype)


def init_params(key, dim_in):
    """Deterministic init mimicking nn.Linear's uniform(-1/sqrt(fan_in), +...)."""
    k1, k2, k3, k4 = jax.random.split(key, 4)
    bound1 = 1.0 / jnp.sqrt(dim_in)
    bound2 = 1.0 / jnp.sqrt(16.0)
    # stored as (in_features, out_features) == PyTorch weight.T
    w1 = jax.random.uniform(k1, (dim_in, 16), jnp.float32, -bound1, bound1)
    b1 = jax.random.uniform(k2, (1, 16), jnp.float32, -bound1, bound1)
    w2 = jax.random.uniform(k3, (16, 2), jnp.float32, -bound2, bound2)
    b2 = jax.random.uniform(k4, (1, 2), jnp.float32, -bound2, bound2)
    return w1, b1, w2, b2


if __name__ == "__main__":
    key = jax.random.PRNGKey(0)
    kx, kx2, kp = jax.random.split(key, 3)

    B, dim_in = 20, 32
    x = jax.random.normal(kx, (B, dim_in), jnp.float32)
    w1, b1, w2, b2 = init_params(kp, dim_in)

    # pure-JAX reference (eval mode: dropout == identity)
    ref = jnp.maximum(x @ w1 + b1, 0.0) @ w2 + b2

    # 1) single-tile path (B padded up to one 128-row tile)
    out = jax.block_until_ready(baseline1_mlp(x, w1, b1, w2, b2))
    assert out.shape == (B, 2)
    assert jnp.allclose(out, ref, atol=1e-5, rtol=1e-5)

    # 2) multi-step grid path: tb=128 -> 3 grid steps over a padded batch
    B2 = 300
    x2 = jax.random.normal(kx2, (B2, dim_in), jnp.float32)
    ref2 = jnp.maximum(x2 @ w1 + b1, 0.0) @ w2 + b2
    out2 = jax.block_until_ready(baseline1_mlp(x2, w1, b1, w2, b2, tb=128))
    assert out2.shape == (B2, 2)
    assert jnp.allclose(out2, ref2, atol=1e-5, rtol=1e-5)

    print("KERNEL_OK")
</pallas_src>

<mosaic_0001>
module attributes {stable_mosaic.version = 11 : i64} {
  func.func @mlp_kernel(%arg0: i32, %arg1: memref<128x32xf32, #tpu.memory_space<vmem>>, %arg2: memref<32x16xf32, #tpu.memory_space<vmem>>, %arg3: memref<1x16xf32, #tpu.memory_space<vmem>>, %arg4: memref<2x16xf32, #tpu.memory_space<vmem>>, %arg5: memref<2x1xf32, #tpu.memory_space<vmem>>, %arg6: memref<2x128xf32, #tpu.memory_space<vmem>>) attributes {dimension_semantics = [#tpu.dimension_semantics<parallel>], iteration_bounds = array<i64: 1>, scalar_prefetch = 0 : i64, scratch_operands = 0 : i64, tpu.core_type = #tpu.core_type<tc>, window_params = [{transform_indices = @transform_0, window_bounds = array<i64: 128, 32>}, {pipeline_mode = #tpu.pipeline_mode<synchronous>, transform_indices = @transform_1, window_bounds = array<i64: 32, 16>}, {pipeline_mode = #tpu.pipeline_mode<synchronous>, transform_indices = @transform_2, window_bounds = array<i64: 1, 16>}, {pipeline_mode = #tpu.pipeline_mode<synchronous>, transform_indices = @transform_3, window_bounds = array<i64: 2, 16>}, {pipeline_mode = #tpu.pipeline_mode<synchronous>, transform_indices = @transform_4, window_bounds = array<i64: 2, 1>}, {transform_indices = @transform_5, window_bounds = array<i64: 2, 128>}]} {
    %c0 = arith.constant 0 : index
    %c0_0 = arith.constant 0 : index
    %0 = vector.load %arg1[%c0, %c0_0] : memref<128x32xf32, #tpu.memory_space<vmem>>, vector<128x32xf32>
    %c0_1 = arith.constant 0 : index
    %c0_2 = arith.constant 0 : index
    %1 = vector.load %arg2[%c0_1, %c0_2] : memref<32x16xf32, #tpu.memory_space<vmem>>, vector<32x16xf32>
    %cst = arith.constant dense<0.000000e+00> : vector<128x16xf32>
    %2 = tpu.matmul %0, %1, %cst {dimension_numbers = #tpu.dot_dimension_numbers<[1], [0], [0], [1], [0, 0, 1, 1], [], []>} : vector<128x32xf32>, vector<32x16xf32>, vector<128x16xf32> -> vector<128x16xf32>
    %c0_3 = arith.constant 0 : index
    %c0_4 = arith.constant 0 : index
    %3 = vector.load %arg3[%c0_3, %c0_4] : memref<1x16xf32, #tpu.memory_space<vmem>>, vector<1x16xf32>
    %4 = vector.broadcast %3 : vector<1x16xf32> to vector<128x16xf32>
    %5 = arith.addf %2, %4 : vector<128x16xf32>
    %cst_5 = arith.constant 0.000000e+00 : f32
    %6 = vector.broadcast %cst_5 : f32 to vector<128x16xf32>
    %7 = arith.maximumf %5, %6 : vector<128x16xf32>
    %c0_6 = arith.constant 0 : index
    %c0_7 = arith.constant 0 : index
    %8 = vector.load %arg4[%c0_6, %c0_7] : memref<2x16xf32, #tpu.memory_space<vmem>>, vector<2x16xf32>
    %cst_8 = arith.constant dense<0.000000e+00> : vector<2x128xf32>
    %9 = tpu.matmul %8, %7, %cst_8 {dimension_numbers = #tpu.dot_dimension_numbers<[1], [1], [0], [0], [0, 0, 1, 0], [], []>} : vector<2x16xf32>, vector<128x16xf32>, vector<2x128xf32> -> vector<2x128xf32>
    %c0_9 = arith.constant 0 : index
    %c0_10 = arith.constant 0 : index
    %10 = vector.load %arg5[%c0_9, %c0_10] : memref<2x1xf32, #tpu.memory_space<vmem>>, vector<2x1xf32>
    %11 = vector.broadcast %10 : vector<2x1xf32> to vector<2x128xf32>
    %12 = arith.addf %9, %11 : vector<2x128xf32>
    %c0_11 = arith.constant 0 : index
    %c0_12 = arith.constant 0 : index
    %13 = vector.load %arg6[%c0_11, %c0_12] : memref<2x128xf32, #tpu.memory_space<vmem>>, vector<2x128xf32>
    tpu.vector_store %arg6[%c0_11, %c0_12], %12 {strides = array<i32>} : memref<2x128xf32, #tpu.memory_space<vmem>>, vector<2x128xf32>,
    return
  }
  func.func @transform_0(%arg0: i32) -> (i32, i32) {
    %c0_i32 = arith.constant 0 : i32
    %c0_i32_0 = arith.constant 0 : i32
    return %arg0, %c0_i32 : i32, i32
  }
  func.func @transform_1(%arg0: i32) -> (i32, i32) {
    %c0_i32 = arith.constant 0 : i32
    %c0_i32_0 = arith.constant 0 : i32
    %c0_i32_1 = arith.constant 0 : i32
    return %c0_i32, %c0_i32_0 : i32, i32
  }
  func.func @transform_2(%arg0: i32) -> (i32, i32) {
    %c0_i32 = arith.constant 0 : i32
    %c0_i32_0 = arith.constant 0 : i32
    %c0_i32_1 = arith.constant 0 : i32
    return %c0_i32, %c0_i32_0 : i32, i32
  }
  func.func @transform_3(%arg0: i32) -> (i32, i32) {
    %c0_i32 = arith.constant 0 : i32
    %c0_i32_0 = arith.constant 0 : i32
    %c0_i32_1 = arith.constant 0 : i32
    return %c0_i32, %c0_i32_0 : i32, i32
  }
  func.func @transform_4(%arg0: i32) -> (i32, i32) {
    %c0_i32 = arith.constant 0 : i32
    %c0_i32_0 = arith.constant 0 : i32
    %c0_i32_1 = arith.constant 0 : i32
    return %c0_i32, %c0_i32_0 : i32, i32
  }
  func.func @transform_5(%arg0: i32) -> (i32, i32) {
    %c0_i32 = arith.constant 0 : i32
    %c0_i32_0 = arith.constant 0 : i32
    return %c0_i32, %arg0 : i32, i32
  }
}

</mosaic_0001>

<llo_original>
// kernel: tpu_custom_call.1
$region0: #{tpu_custom_call.1}
  #allocation0 [shape = 'u32[]', space=smem, size = 0x4, offset = 0x4, fixed_abs, tag = 'smem constant byte address 0x4 - core index']
  #allocation1 [shape = 'u32[144,128]{1,0:T(1,128)}', space=vmem, size = 0x12000, scoped, tag = 'internal scratch']
  %s0 = inlined_call_operand.vmem [shape: f32[128,32], index: 0, kind: input, shape index: {}]
  %s1 = inlined_call_operand.vmem [shape: f32[32,16], index: 1, kind: input, shape index: {}]
  %s2 = inlined_call_operand.vmem [shape: f32[1,16], index: 2, kind: input, shape index: {}]
  %s3 = inlined_call_operand.vmem [shape: f32[2,16], index: 3, kind: input, shape index: {}]
  %s4 = inlined_call_operand.vmem [shape: f32[2,1], index: 4, kind: input, shape index: {}]
  %s5 = inlined_call_operand.hbm [shape: f32[2,128], index: 5, kind: output, shape index: {}]
  %s6 = sld [smem:[#allocation0]]
  $region30: #{tpu_custom_call.1} parent=0
    _
  %s8 = ssub.s32 1, %s6
  %s9 = scalar_select 0, %s8, %s6
  $region1: #{tpu_custom_call.1} parent=0
    #allocation2 [shape = 'u8[1024]{0}', space=vmem, size = 0x400, scoped, tag = 'output window, operand 0, single buffered']
    #allocation3 [shape = 's32[1]{0}', space=sflag, size = 0x4, scoped, tag = 'scoped memory for tpu_custom_call.1']
    %10 = vsyncpa [#allocation3], 0
    // Predicated region
    $region2: #{tpu_custom_call.1} parent=1 // pred_check
      _
    $region3: #{tpu_custom_call.1} parent=1 // pred_check_branch
      %12 = sbr.rel (0) target = $region5
    $region4: #{tpu_custom_call.1} parent=1 // pred_region
      _
    $region5: #{tpu_custom_call.1} parent=1 // pred_fallthru
      _
    // Predicated region
    $region6: #{tpu_custom_call.1} parent=1 // pred_check
      _
    $region7: #{tpu_custom_call.1} parent=1 // pred_check_branch
      %14 = sbr.rel (0) target = $region9
    $region8: #{tpu_custom_call.1} parent=1 // pred_region
      _
    $region9: #{tpu_custom_call.1} parent=1 // pred_fallthru
      _
    // Predicated region
    $region10: #{tpu_custom_call.1} parent=1 // pred_check
      _
    $region11: #{tpu_custom_call.1} parent=1 // pred_check_branch
      %16 = sbr.rel (0) target = $region13
    $region12: #{tpu_custom_call.1} parent=1 // pred_region
      _
    $region13: #{tpu_custom_call.1} parent=1 // pred_fallthru
      _
    // Predicated region
    $region14: #{tpu_custom_call.1} parent=1 // pred_check
      _
    $region15: #{tpu_custom_call.1} parent=1 // pred_check_branch
      %18 = sbr.rel (0) target = $region17
    $region16: #{tpu_custom_call.1} parent=1 // pred_region
      _
    $region17: #{tpu_custom_call.1} parent=1 // pred_fallthru
      _
    // Predicated region
    $region18: #{tpu_custom_call.1} parent=1 // pred_check
      _
    $region19: #{tpu_custom_call.1} parent=1 // pred_check_branch
      %20 = sbr.rel (0) target = $region21
    $region20: #{tpu_custom_call.1} parent=1 // pred_region
      _
    $region21: #{tpu_custom_call.1} parent=1 // pred_fallthru
      _
    %v21 = vld [vmem:[%s0] sm:$0xff]
    %v22 = vld [vmem:[%s0 + $0x8] sm:$0xff]
    %v23 = vld [vmem:[%s0 + $0x10] sm:$0xff]
    %v24 = vld [vmem:[%s0 + $0x18] sm:$0xff]
    %v25 = vld [vmem:[%s0 + $0x20] sm:$0xff]
    %v26 = vld [vmem:[%s0 + $0x28] sm:$0xff]
    %v27 = vld [vmem:[%s0 + $0x30] sm:$0xff]
    %v28 = vld [vmem:[%s0 + $0x38] sm:$0xff]
    %v29 = vld [vmem:[%s0 + $0x40] sm:$0xff]
    %v30 = vld [vmem:[%s0 + $0x48] sm:$0xff]
    %v31 = vld [vmem:[%s0 + $0x50] sm:$0xff]
    %v32 = vld [vmem:[%s0 + $0x58] sm:$0xff]
    %v33 = vld [vmem:[%s0 + $0x60] sm:$0xff]
    %v34 = vld [vmem:[%s0 + $0x68] sm:$0xff]
    %v35 = vld [vmem:[%s0 + $0x70] sm:$0xff]
    %v36 = vld [vmem:[%s0 + $0x78] sm:$0xff]
    %v37 = vld [vmem:[%s1] sm:$0xff]
    %v38 = vld [vmem:[%s1 + $0x8] sm:$0xff]
    %v39 = vld [vmem:[%s1 + $0x10] sm:$0xff]
    %v40 = vld [vmem:[%s1 + $0x18] sm:$0xff]
    %v41 = vld [vmem:[%s2] sm:$0x1]
    %v43 = vlaneseq
    %v44 = vshrl.u32 %v43, 7
    %v45 = vsub.s32 0, %v44
    %v46 = vrot.slane %v41, %v45
    %vm48 = vcmask 261120
    %v50 = vsel %vm48, %v21, 0
    %v53 = vsel %vm48, %v22, 0
    %v56 = vsel %vm48, %v23, 0
    %v59 = vsel %vm48, %v24, 0
    %v62 = vsel %vm48, %v25, 0
    %v65 = vsel %vm48, %v26, 0
    %v68 = vsel %vm48, %v27, 0
    %v71 = vsel %vm48, %v28, 0
    %v74 = vsel %vm48, %v29, 0
    %v77 = vsel %vm48, %v30, 0
    %v80 = vsel %vm48, %v31, 0
    %v83 = vsel %vm48, %v32, 0
    %v86 = vsel %vm48, %v33, 0
    %v89 = vsel %vm48, %v34, 0
    %v92 = vsel %vm48, %v35, 0
    %v95 = vsel %vm48, %v36, 0
    %97 = vmatprep.subr.mxu0 0.0
    %98 = vmatpush1.msra.mxu0 %v37
    %99 = vmatprep.subr.mxu0 0.0
    %100 = vmatpush1.msra.mxu0 %v38
    %101 = vmatprep.subr.mxu0 0.0
    %102 = vmatpush1.msra.mxu0 %v39
    %103 = vmatprep.subr.mxu0 0.0
    %104 = vmatpush1.msra.mxu0 %v40
    %105 = vmatprep.subr.mxu0 0.0
    %106 = vmatpush1.msra.mxu0 0.0
    %107 = vmatprep.subr.mxu0 0.0
    %108 = vmatpush1.msra.mxu0 0.0
    %109 = vmatprep.subr.mxu0 0.0
    %110 = vmatpush1.msra.mxu0 0.0
    %111 = vmatprep.subr.mxu0 0.0
    %112 = vmatpush1.msra.mxu0 0.0
    %113 = vmatprep.subr.mxu0 0.0
    %114 = vmatpush1.msra.mxu0 0.0
    %115 = vmatprep.subr.mxu0 0.0
    %116 = vmatpush1.msra.mxu0 0.0
    %117 = vmatprep.subr.mxu0 0.0
    %118 = vmatpush1.msra.mxu0 0.0
    %119 = vmatprep.subr.mxu0 0.0
    %120 = vmatpush1.msra.mxu0 0.0
    %121 = vmatprep.subr.mxu0 0.0
    %122 = vmatpush1.msra.mxu0 0.0
    %123 = vmatprep.subr.mxu0 0.0
    %124 = vmatpush1.msra.mxu0 0.0
    %125 = vmatprep.subr.mxu0 0.0
    %126 = vmatpush1.msra.mxu0 0.0
    %127 = vmatprep.subr.mxu0 0.0
    %128 = vmatpush1.msra.mxu0 0.0
    %129 = vmatprep.subr.mxu0 0.0
    %130 = vmatpush1.msra.mxu0 0.0
    %131 = vmatprep.subr.mxu0 0.0
    %132 = vmatpush1.msra.mxu0 0.0
    %133 = vmatprep.subr.mxu0 0.0
    %134 = vmatpush1.msra.mxu0 0.0
    %135 = vmatprep.subr.mxu0 0.0
    %136 = vmatpush1.msra.mxu0 0.0
    %137 = vmatprep.subr.mxu0 0.0
    %138 = vmatpush1.msra.mxu0 0.0
    %139 = vmatprep.subr.mxu0 0.0
    %140 = vmatpush1.msra.mxu0 0.0
    %141 = vmatprep.subr.mxu0 0.0
    %142 = vmatpush1.msra.mxu0 0.0
    %143 = vmatprep.subr.mxu0 0.0
    %144 = vmatpush1.msra.mxu0 0.0
    %145 = vmatprep.subr.mxu0 0.0
    %146 = vmatpush1.msra.mxu0 0.0
    %147 = vmatprep.subr.mxu0 0.0
    %148 = vmatpush1.msra.mxu0 0.0
    %149 = vmatprep.subr.mxu0 0.0
    %150 = vmatpush1.msra.mxu0 0.0
    %151 = vmatprep.subr.mxu0 0.0
    %152 = vmatpush1.msra.mxu0 0.0
    %153 = vmatprep.subr.mxu0 0.0
    %154 = vmatpush1.msra.mxu0 0.0
    %155 = vmatprep.subr.mxu0 0.0
    %156 = vmatpush1.msra.mxu0 0.0
    %157 = vmatprep.subr.mxu0 0.0
    %158 = vmatpush1.msra.mxu0 0.0
    %159 = vmatprep.subr.mxu0 0.0
    %160 = vmatpush1.msra.mxu0 0.0
    %161 = vmatprep.mubr.f32.mxu0 0.0
    %162 = vmatmul.mubr.f32.gmra.mrb[0].mxu0 %v50
    %v163 = vpop.f32.mrb[0].mxu0
    %v164 = vadd.f32 %v46, %v163
    %v165 = vpop.f32.mrb[0].mxu0
    %166 = vmatprep.mubr.f32.mxu0 0.0
    %167 = vmatmul.mubr.f32.gmra.mrb[0].mxu0 %v53
    %v168 = vpop.f32.mrb[0].mxu0
    %v169 = vadd.f32 %v46, %v168
    %v170 = vpop.f32.mrb[0].mxu0
    %171 = vmatprep.mubr.f32.mxu0 0.0
    %172 = vmatmul.mubr.f32.gmra.mrb[0].mxu0 %v56
    %v173 = vpop.f32.mrb[0].mxu0
    %v174 = vadd.f32 %v46, %v173
    %v175 = vpop.f32.mrb[0].mxu0
    %176 = vmatprep.mubr.f32.mxu0 0.0
    %177 = vmatmul.mubr.f32.gmra.mrb[0].mxu0 %v59
    %v178 = vpop.f32.mrb[0].mxu0
    %v179 = vadd.f32 %v46, %v178
    %v180 = vpop.f32.mrb[0].mxu0
    %181 = vmatprep.mubr.f32.mxu0 0.0
    %182 = vmatmul.mubr.f32.gmra.mrb[0].mxu0 %v62
    %v183 = vpop.f32.mrb[0].mxu0
    %v184 = vadd.f32 %v46, %v183
    %v185 = vpop.f32.mrb[0].mxu0
    %186 = vmatprep.mubr.f32.mxu0 0.0
    %187 = vmatmul.mubr.f32.gmra.mrb[0].mxu0 %v65
    %v188 = vpop.f32.mrb[0].mxu0
    %v189 = vadd.f32 %v46, %v188
    %v190 = vpop.f32.mrb[0].mxu0
    %191 = vmatprep.mubr.f32.mxu0 0.0
    %192 = vmatmul.mubr.f32.gmra.mrb[0].mxu0 %v68
    %v193 = vpop.f32.mrb[0].mxu0
    %v194 = vadd.f32 %v46, %v193
    %v195 = vpop.f32.mrb[0].mxu0
    %196 = vmatprep.mubr.f32.mxu0 0.0
    %197 = vmatmul.mubr.f32.gmra.mrb[0].mxu0 %v71
    %v198 = vpop.f32.mrb[0].mxu0
    %v199 = vadd.f32 %v46, %v198
    %v200 = vpop.f32.mrb[0].mxu0
    %201 = vmatprep.mubr.f32.mxu0 0.0
    %202 = vmatmul.mubr.f32.gmra.mrb[0].mxu0 %v74
    %v203 = vpop.f32.mrb[0].mxu0
    %v204 = vadd.f32 %v46, %v203
    %v205 = vpop.f32.mrb[0].mxu0
    %206 = vmatprep.mubr.f32.mxu0 0.0
    %207 = vmatmul.mubr.f32.gmra.mrb[0].mxu0 %v77
    %v208 = vpop.f32.mrb[0].mxu0
    %v209 = vadd.f32 %v46, %v208
    %v210 = vpop.f32.mrb[0].mxu0
    %211 = vmatprep.mubr.f32.mxu0 0.0
    %212 = vmatmul.mubr.f32.gmra.mrb[0].mxu0 %v80
    %v213 = vpop.f32.mrb[0].mxu0
    %v214 = vadd.f32 %v46, %v213
    %v215 = vpop.f32.mrb[0].mxu0
    %216 = vmatprep.mubr.f32.mxu0 0.0
    %217 = vmatmul.mubr.f32.gmra.mrb[0].mxu0 %v83
    %v218 = vpop.f32.mrb[0].mxu0
    %v219 = vadd.f32 %v46, %v218
    %v220 = vpop.f32.mrb[0].mxu0
    %221 = vmatprep.mubr.f32.mxu0 0.0
    %222 = vmatmul.mubr.f32.gmra.mrb[0].mxu0 %v86
    %v223 = vpop.f32.mrb[0].mxu0
    %v224 = vadd.f32 %v46, %v223
    %v225 = vpop.f32.mrb[0].mxu0
    %226 = vmatprep.mubr.f32.mxu0 0.0
    %227 = vmatmul.mubr.f32.gmra.mrb[0].mxu0 %v89
    %v228 = vpop.f32.mrb[0].mxu0
    %v229 = vadd.f32 %v46, %v228
    %v230 = vpop.f32.mrb[0].mxu0
    %231 = vmatprep.mubr.f32.mxu0 0.0
    %232 = vmatmul.mubr.f32.gmra.mrb[0].mxu0 %v92
    %v233 = vpop.f32.mrb[0].mxu0
    %v234 = vadd.f32 %v46, %v233
    %v235 = vpop.f32.mrb[0].mxu0
    %236 = vmatprep.mubr.f32.mxu0 0.0
    %237 = vmatmul.mubr.f32.gmra.mrb[0].mxu0 %v95
    %v238 = vpop.f32.mrb[0].mxu0
    %v239 = vadd.f32 %v46, %v238
    %v240 = vpop.f32.mrb[0].mxu0
    %241 = vdwg.mxu0
    %v242 = vmax.f32 %v164, 0.0
    %v243 = vmax.f32 %v169, 0.0
    %v244 = vmax.f32 %v174, 0.0
    %v245 = vmax.f32 %v179, 0.0
    %v246 = vmax.f32 %v184, 0.0
    %v247 = vmax.f32 %v189, 0.0
    %v248 = vmax.f32 %v194, 0.0
    %v249 = vmax.f32 %v199, 0.0
    %v250 = vmax.f32 %v204, 0.0
    %v251 = vmax.f32 %v209, 0.0
    %v252 = vmax.f32 %v214, 0.0
    %v253 = vmax.f32 %v219, 0.0
    %v254 = vmax.f32 %v224, 0.0
    %v255 = vmax.f32 %v229, 0.0
    %v256 = vmax.f32 %v234, 0.0
    %v257 = vmax.f32 %v239, 0.0
    %v258 = vld [vmem:[%s3] sm:$0x3]
    %v259 = vld [vmem:[%s4] sm:$0x3]
    %261 = vset.pattern.permute.xlu0 0
    %262 = vperm.xlu0 %261, %v259
    %v263 = vpop.permute.xlu0 %262
    %vm265 = vcmask 130048
    %v267 = vsel %vm265, %v258, 0
    %v270 = vsel %vm265, %v242, 0
    %v273 = vsel %vm265, %v243, 0
    %v276 = vsel %vm265, %v244, 0
    %v279 = vsel %vm265, %v245, 0
    %v282 = vsel %vm265, %v246, 0
    %v285 = vsel %vm265, %v247, 0
    %v288 = vsel %vm265, %v248, 0
    %v291 = vsel %vm265, %v249, 0
    %v294 = vsel %vm265, %v250, 0
    %v297 = vsel %vm265, %v251, 0
    %v300 = vsel %vm265, %v252, 0
    %v303 = vsel %vm265, %v253, 0
    %v306 = vsel %vm265, %v254, 0
    %v309 = vsel %vm265, %v255, 0
    %v312 = vsel %vm265, %v256, 0
    %v315 = vsel %vm265, %v257, 0
    %317 = vmatprep.subr.mxu0 0.0
    %318 = vmatpush1.xpose.msra.mxu0 %v270
    %319 = vmatprep.subr.mxu0 0.0
    %320 = vmatpush1.xpose.msra.mxu0 %v273
    %321 = vmatprep.subr.mxu0 0.0
    %322 = vmatpush1.xpose.msra.mxu0 %v276
    %323 = vmatprep.subr.mxu0 0.0
    %324 = vmatpush1.xpose.msra.mxu0 %v279
    %325 = vmatprep.subr.mxu0 0.0
    %326 = vmatpush1.xpose.msra.mxu0 %v282
    %327 = vmatprep.subr.mxu0 0.0
    %328 = vmatpush1.xpose.msra.mxu0 %v285
    %329 = vmatprep.subr.mxu0 0.0
    %330 = vmatpush1.xpose.msra.mxu0 %v288
    %331 = vmatprep.subr.mxu0 0.0
    %332 = vmatpush1.xpose.msra.mxu0 %v291
    %333 = vmatprep.subr.mxu0 0.0
    %334 = vmatpush1.xpose.msra.mxu0 %v294
    %335 = vmatprep.subr.mxu0 0.0
    %336 = vmatpush1.xpose.msra.mxu0 %v297
    %337 = vmatprep.subr.mxu0 0.0
    %338 = vmatpush1.xpose.msra.mxu0 %v300
    %339 = vmatprep.subr.mxu0 0.0
    %340 = vmatpush1.xpose.msra.mxu0 %v303
    %341 = vmatprep.subr.mxu0 0.0
    %342 = vmatpush1.xpose.msra.mxu0 %v306
    %343 = vmatprep.subr.mxu0 0.0
    %344 = vmatpush1.xpose.msra.mxu0 %v309
    %345 = vmatprep.subr.mxu0 0.0
    %346 = vmatpush1.xpose.msra.mxu0 %v312
    %347 = vmatprep.subr.mxu0 0.0
    %348 = vmatpush1.xpose.msra.mxu0 %v315
    %349 = vmatprep.subr.mxu0 0.0
    %350 = vmatpush1.xpose.msra.mxu0 0.0
    %351 = vmatprep.subr.mxu0 0.0
    %352 = vmatpush1.xpose.msra.mxu0 0.0
    %353 = vmatprep.subr.mxu0 0.0
    %354 = vmatpush1.xpose.msra.mxu0 0.0
    %355 = vmatprep.subr.mxu0 0.0
    %356 = vmatpush1.xpose.msra.mxu0 0.0
    %357 = vmatprep.subr.mxu0 0.0
    %358 = vmatpush1.xpose.msra.mxu0 0.0
    %359 = vmatprep.subr.mxu0 0.0
    %360 = vmatpush1.xpose.msra.mxu0 0.0
    %361 = vmatprep.subr.mxu0 0.0
    %362 = vmatpush1.xpose.msra.mxu0 0.0
    %363 = vmatprep.subr.mxu0 0.0
    %364 = vmatpush1.xpose.msra.mxu0 0.0
    %365 = vmatprep.subr.mxu0 0.0
    %366 = vmatpush1.xpose.msra.mxu0 0.0
    %367 = vmatprep.subr.mxu0 0.0
    %368 = vmatpush1.xpose.msra.mxu0 0.0
    %369 = vmatprep.subr.mxu0 0.0
    %370 = vmatpush1.xpose.msra.mxu0 0.0
    %371 = vmatprep.subr.mxu0 0.0
    %372 = vmatpush1.xpose.msra.mxu0 0.0
    %373 = vmatprep.subr.mxu0 0.0
    %374 = vmatpush1.xpose.msra.mxu0 0.0
    %375 = vmatprep.subr.mxu0 0.0
    %376 = vmatpush1.xpose.msra.mxu0 0.0
    %377 = vmatprep.subr.mxu0 0.0
    %378 = vmatpush1.xpose.msra.mxu0 0.0
    %379 = vmatprep.subr.mxu0 0.0
    %380 = vmatpush1.xpose.msra.mxu0 0.0
    %381 = vmatprep.mubr.f32.mxu0 0.0
    %382 = vmatmul.mubr.f32.gmra.mrb[0].mxu0 %v267
    %v383 = vpop.f32.mrb[0].mxu0
    %v384 = vadd.f32 %v263, %v383
    %v385 = vpop.f32.mrb[0].mxu0
    %386 = vdwg.mxu0
    %387 = vst [vmem:[#allocation2] sm:$0x3] %v384
    // Predicated region
    $region22: #{tpu_custom_call.1} parent=1 // pred_check
      _
    $region23: #{tpu_custom_call.1} parent=1 // pred_check_branch
      %389 = sbr.rel (0) target = $region25
    $region24: #{tpu_custom_call.1} parent=1 // pred_region
      %s391 = ssub.s32 32, 32
      %392 = vsyncadd [#allocation3], %s391
      %s394 = sshll.u32 [#allocation2], 4
      %s395 = int_to_ptr.vmem [resolvable:$true] %s394
      %397 = dma.vmem_to_hbm [thread:$0]  %s395, 32, %s5, [#allocation3]
    $region25: #{tpu_custom_call.1} parent=1 // pred_fallthru
      _
    // Predicated region
    $region26: #{tpu_custom_call.1} parent=1 // pred_check
      _
    $region27: #{tpu_custom_call.1} parent=1 // pred_check_branch
      %399 = sbr.rel (0) target = $region29
    $region28: #{tpu_custom_call.1} parent=1 // pred_region
      %400 = dma.done [#allocation3], 32
    $region29: #{tpu_custom_call.1} parent=1 // pred_fallthru
      _
    %401 = vsyncpa [#allocation3], 1

</llo_original>
